<compile_context>
chip_gen: v5e
topology: v5e:2x2
jax: 0.10.0
libtpu: 0.0.40
codegen_flags: <defaults>
</compile_context>

<pallas_src>
import jax
import jax.numpy as jnp
from jax.experimental import pallas as pl
from jax.experimental.pallas import tpu as pltpu

OBS_N = 8                      # FlappyBirdWrapper observation size
ACT_N = 2                      # number of actions
HIDDEN_N = 128
OUT_ROWS = 16                  # Q rows padded 2 -> 16 (one bf16 sublane tile for W3)
W_ROWS = 2 * HIDDEN_N + OUT_ROWS   # 272 packed weight rows
LANE = 128
TB_MAX = 1024                  # max batch-tile (lane) width


def _round_up(x, m):
    return ((x + m - 1) // m) * m


def _choose_tiling(batch):
    """Pick (B_pad, TB): lane-aligned tiles; >=2 grid steps for big batches (v7x)."""
    b_pad = _round_up(batch, LANE)
    if b_pad < 2 * LANE:       # tiny / online-inference batch: single tile
        return b_pad, b_pad
    tb = min(TB_MAX, _round_up(b_pad // 2, LANE))
    b_pad = _round_up(b_pad, tb)
    return b_pad, tb


def mlp_kernel(obs_ref, w_ref, b_ref, out_ref):
    # obs_ref: [OBS_N, TB] f32   observations, transposed (batch on lanes)
    # w_ref:   [272, 128]  bf16  W1 (cols padded 8->128) | W2 | W3 (rows 2->16)
    # b_ref:   [128, 8]    f32   bias columns: b1 | b2 | b3 (padded)
    # out_ref: [16, TB]    f32   Q^T; rows >= ACT_N are zero-weight padding
    tb = obs_ref.shape[1]

    # Zero-extend features 8 -> 128 along sublanes (tile-aligned, VMEM-only),
    # then drop to bf16 for the MXU.
    x = jnp.concatenate(
        [obs_ref[...], jnp.zeros((HIDDEN_N - OBS_N, tb), jnp.float32)], axis=0
    ).astype(jnp.bfloat16)                                   # [128, TB]

    w1 = w_ref[0:HIDDEN_N, :]                                # [128, 128]
    w2 = w_ref[HIDDEN_N:2 * HIDDEN_N, :]                     # [128, 128]
    w3 = w_ref[2 * HIDDEN_N:2 * HIDDEN_N + OUT_ROWS, :]      # [16, 128]

    b_all = b_ref[...]                                       # [128, 8] f32
    b1 = b_all[:, 0:1]                                       # [128, 1]
    b2 = b_all[:, 1:2]                                       # [128, 1]
    b3 = b_all[0:OUT_ROWS, 2:3]                              # [16, 1]

    # bf16 MXU matmuls with f32 accumulation; bias/tanh stay in f32 (EUP/VPU).
    h1 = jnp.tanh(jnp.dot(w1, x, preferred_element_type=jnp.float32) + b1)
    h2 = jnp.tanh(
        jnp.dot(w2, h1.astype(jnp.bfloat16), preferred_element_type=jnp.float32) + b2
    )
    q = jnp.dot(w3, h2.astype(jnp.bfloat16), preferred_element_type=jnp.float32) + b3
    out_ref[...] = q                                         # lane-dense f32 store


def pack_weights(w1, w2, w3, dtype=jnp.bfloat16):
    """Pack PyTorch-layout weights (out, in) into one lane-dense bf16 buffer."""
    # w1: [HIDDEN, OBS_N], w2: [HIDDEN, HIDDEN], w3: [ACT_N, HIDDEN]
    w1p = jnp.zeros((HIDDEN_N, HIDDEN_N), jnp.float32).at[:, :OBS_N].set(w1)
    w3p = jnp.zeros((OUT_ROWS, HIDDEN_N), jnp.float32).at[:ACT_N, :].set(w3)
    return jnp.concatenate([w1p, w2, w3p], axis=0).astype(dtype)   # [272, 128]


def pack_biases(b1, b2, b3):
    """Biases as f32 columns: [:,0]=b1, [:,1]=b2, [:ACT_N,2]=b3."""
    b = jnp.zeros((HIDDEN_N, 8), jnp.float32)
    b = b.at[:, 0].set(b1)
    b = b.at[:, 1].set(b2)
    b = b.at[:ACT_N, 2].set(b3)
    return b                                                  # [128, 8]


def dqn_forward(obs, w_packed, b_packed):
    """obs: [B, OBS_N] f32 -> Q-values [B, ACT_N] f32."""
    B = obs.shape[0]
    B_pad, TB = _choose_tiling(B)

    # Compact transposed obs slab (batch on lanes). No 128-wide padding pass.
    obs_t = jnp.zeros((OBS_N, B_pad), jnp.float32).at[:, :B].set(obs.T)

    cost = pl.CostEstimate(
        flops=2 * B_pad * HIDDEN_N * (2 * HIDDEN_N + OUT_ROWS),
        transcendentals=2 * B_pad * HIDDEN_N,
        bytes_accessed=(obs_t.size * 4 + int(w_packed.size) * 2
                        + int(b_packed.size) * 4 + OUT_ROWS * B_pad * 4),
    )

    out_t = pl.pallas_call(
        mlp_kernel,
        out_shape=jax.ShapeDtypeStruct((OUT_ROWS, B_pad), jnp.float32),
        grid=(B_pad // TB,),
        in_specs=[
            pl.BlockSpec((OBS_N, TB), lambda i: (0, i)),        # obs tile
            pl.BlockSpec((W_ROWS, HIDDEN_N), lambda i: (0, 0)),  # resident weights
            pl.BlockSpec((HIDDEN_N, 8), lambda i: (0, 0)),       # resident biases
        ],
        out_specs=pl.BlockSpec((OUT_ROWS, TB), lambda i: (0, i)),
        compiler_params=pltpu.CompilerParams(
            dimension_semantics=("parallel",),
        ),
        cost_estimate=cost,
    )(obs_t, w_packed, b_packed)

    return out_t[:ACT_N, :B].T


def init_params(key):
    # Matches PyTorch init: weight ~ N(0, 0.1), bias = 0.  PyTorch (out, in) layout.
    k1, k2, k3 = jax.random.split(key, 3)
    w1 = 0.1 * jax.random.normal(k1, (HIDDEN_N, OBS_N), jnp.float32)
    w2 = 0.1 * jax.random.normal(k2, (HIDDEN_N, HIDDEN_N), jnp.float32)
    w3 = 0.1 * jax.random.normal(k3, (ACT_N, HIDDEN_N), jnp.float32)
    b1 = jnp.zeros((HIDDEN_N,), jnp.float32)
    b2 = jnp.zeros((HIDDEN_N,), jnp.float32)
    b3 = jnp.zeros((ACT_N,), jnp.float32)
    return w1, b1, w2, b2, w3, b3


def reference_forward(obs, w1, b1, w2, b2, w3, b3):
    # Pure-JAX reference mirroring the kernel's bf16-operand / f32-accumulate math.
    bf = lambda a: a.astype(jnp.bfloat16)
    f32 = jnp.float32
    h1 = jnp.tanh(jnp.dot(bf(obs), bf(w1).T, preferred_element_type=f32) + b1)
    h2 = jnp.tanh(jnp.dot(bf(h1), bf(w2).T, preferred_element_type=f32) + b2)
    return jnp.dot(bf(h2), bf(w3).T, preferred_element_type=f32) + b3


if __name__ == "__main__":
    key = jax.random.PRNGKey(0)
    k_obs, k_params, k_bias = jax.random.split(key, 3)

    B = 8  # small batch of observations
    obs = jax.random.normal(k_obs, (B, OBS_N), jnp.float32)

    w1, b1, w2, b2, w3, b3 = init_params(k_params)
    # Exercise the bias path with non-zero biases (PyTorch init zeroes them).
    kb1, kb2, kb3 = jax.random.split(k_bias, 3)
    b1 = 0.1 * jax.random.normal(kb1, (HIDDEN_N,), jnp.float32)
    b2 = 0.1 * jax.random.normal(kb2, (HIDDEN_N,), jnp.float32)
    b3 = 0.1 * jax.random.normal(kb3, (ACT_N,), jnp.float32)

    w_packed = pack_weights(w1, w2, w3)
    b_packed = pack_biases(b1, b2, b3)

    q_vals = dqn_forward(obs, w_packed, b_packed)
    q_vals = jax.block_until_ready(q_vals)

    ref = reference_forward(obs, w1, b1, w2, b2, w3, b3)
    max_err = jnp.max(jnp.abs(q_vals - ref))
    assert q_vals.shape == (B, ACT_N)
    assert jnp.allclose(q_vals, ref, atol=2e-3, rtol=2e-2), (
        f"mismatch vs reference, max|diff|={max_err}"
    )

    print("KERNEL_OK")
</pallas_src>

<mosaic_0001>
module attributes {stable_mosaic.version = 11 : i64} {
  func.func @mlp_kernel(%arg0: i32, %arg1: memref<8x128xf32, #tpu.memory_space<vmem>>, %arg2: memref<272x128xbf16, #tpu.memory_space<vmem>>, %arg3: memref<128x8xf32, #tpu.memory_space<vmem>>, %arg4: memref<16x128xf32, #tpu.memory_space<vmem>>) attributes {dimension_semantics = [#tpu.dimension_semantics<parallel>], iteration_bounds = array<i64: 1>, scalar_prefetch = 0 : i64, scratch_operands = 0 : i64, tpu.core_type = #tpu.core_type<tc>, window_params = [{transform_indices = @transform_0, window_bounds = array<i64: 8, 128>}, {pipeline_mode = #tpu.pipeline_mode<synchronous>, transform_indices = @transform_1, window_bounds = array<i64: 272, 128>}, {pipeline_mode = #tpu.pipeline_mode<synchronous>, transform_indices = @transform_2, window_bounds = array<i64: 128, 8>}, {transform_indices = @transform_3, window_bounds = array<i64: 16, 128>}]} {
    %c0 = arith.constant 0 : index
    %c0_0 = arith.constant 0 : index
    %0 = vector.load %arg1[%c0, %c0_0] : memref<8x128xf32, #tpu.memory_space<vmem>>, vector<8x128xf32>
    %cst = arith.constant 0.000000e+00 : f32
    %1 = vector.broadcast %cst : f32 to vector<120x128xf32>
    %2 = tpu.concatenate %0, %1 in 0 : vector<8x128xf32>, vector<120x128xf32> -> vector<128x128xf32>
    %3 = arith.truncf %2 : vector<128x128xf32> to vector<128x128xbf16>
    %c0_1 = arith.constant 0 : index
    %c0_2 = arith.constant 0 : index
    %4 = vector.load %arg2[%c0_1, %c0_2] : memref<272x128xbf16, #tpu.memory_space<vmem>>, vector<128x128xbf16>
    %c128 = arith.constant 128 : index
    %c0_3 = arith.constant 0 : index
    %5 = vector.load %arg2[%c128, %c0_3] : memref<272x128xbf16, #tpu.memory_space<vmem>>, vector<128x128xbf16>
    %c256 = arith.constant 256 : index
    %c0_4 = arith.constant 0 : index
    %6 = vector.load %arg2[%c256, %c0_4] : memref<272x128xbf16, #tpu.memory_space<vmem>>, vector<16x128xbf16>
    %c0_5 = arith.constant 0 : index
    %c0_6 = arith.constant 0 : index
    %7 = vector.load %arg3[%c0_5, %c0_6] : memref<128x8xf32, #tpu.memory_space<vmem>>, vector<128x8xf32>
    %8 = vector.extract_strided_slice %7 {offsets = [0, 0], sizes = [128, 1], strides = [1, 1]} : vector<128x8xf32> to vector<128x1xf32>
    %9 = vector.extract_strided_slice %7 {offsets = [0, 1], sizes = [128, 1], strides = [1, 1]} : vector<128x8xf32> to vector<128x1xf32>
    %10 = vector.extract_strided_slice %7 {offsets = [0, 2], sizes = [16, 1], strides = [1, 1]} : vector<128x8xf32> to vector<16x1xf32>
    %cst_7 = arith.constant dense<0.000000e+00> : vector<128x128xf32>
    %11 = tpu.matmul %4, %3, %cst_7 {dimension_numbers = #tpu.dot_dimension_numbers<[1], [0], [0], [1], [0, 0, 1, 1], [], []>} : vector<128x128xbf16>, vector<128x128xbf16>, vector<128x128xf32> -> vector<128x128xf32>
    %12 = vector.broadcast %8 : vector<128x1xf32> to vector<128x128xf32>
    %13 = arith.addf %11, %12 : vector<128x128xf32>
    %14 = math.tanh %13 : vector<128x128xf32>
    %15 = arith.truncf %14 : vector<128x128xf32> to vector<128x128xbf16>
    %cst_8 = arith.constant dense<0.000000e+00> : vector<128x128xf32>
    %16 = tpu.matmul %5, %15, %cst_8 {dimension_numbers = #tpu.dot_dimension_numbers<[1], [0], [0], [1], [0, 0, 1, 1], [], []>} : vector<128x128xbf16>, vector<128x128xbf16>, vector<128x128xf32> -> vector<128x128xf32>
    %17 = vector.broadcast %9 : vector<128x1xf32> to vector<128x128xf32>
    %18 = arith.addf %16, %17 : vector<128x128xf32>
    %19 = math.tanh %18 : vector<128x128xf32>
    %20 = arith.truncf %19 : vector<128x128xf32> to vector<128x128xbf16>
    %cst_9 = arith.constant dense<0.000000e+00> : vector<16x128xf32>
    %21 = tpu.matmul %6, %20, %cst_9 {dimension_numbers = #tpu.dot_dimension_numbers<[1], [0], [0], [1], [0, 0, 1, 1], [], []>} : vector<16x128xbf16>, vector<128x128xbf16>, vector<16x128xf32> -> vector<16x128xf32>
    %22 = vector.broadcast %10 : vector<16x1xf32> to vector<16x128xf32>
    %23 = arith.addf %21, %22 : vector<16x128xf32>
    %c0_10 = arith.constant 0 : index
    %c0_11 = arith.constant 0 : index
    %24 = vector.load %arg4[%c0_10, %c0_11] : memref<16x128xf32, #tpu.memory_space<vmem>>, vector<16x128xf32>
    tpu.vector_store %arg4[%c0_10, %c0_11], %23 {strides = array<i32>} : memref<16x128xf32, #tpu.memory_space<vmem>>, vector<16x128xf32>,
    return
  }
  func.func @transform_0(%arg0: i32) -> (i32, i32) {
    %c0_i32 = arith.constant 0 : i32
    %c0_i32_0 = arith.constant 0 : i32
    return %c0_i32, %arg0 : i32, i32
  }
  func.func @transform_1(%arg0: i32) -> (i32, i32) {
    %c0_i32 = arith.constant 0 : i32
    %c0_i32_0 = arith.constant 0 : i32
    %c0_i32_1 = arith.constant 0 : i32
    return %c0_i32, %c0_i32_0 : i32, i32
  }
  func.func @transform_2(%arg0: i32) -> (i32, i32) {
    %c0_i32 = arith.constant 0 : i32
    %c0_i32_0 = arith.constant 0 : i32
    %c0_i32_1 = arith.constant 0 : i32
    return %c0_i32, %c0_i32_0 : i32, i32
  }
  func.func @transform_3(%arg0: i32) -> (i32, i32) {
    %c0_i32 = arith.constant 0 : i32
    %c0_i32_0 = arith.constant 0 : i32
    return %c0_i32, %arg0 : i32, i32
  }
}

</mosaic_0001>

<llo_original>
// kernel: tpu_custom_call.1
$region0: #{tpu_custom_call.1}
  #allocation0 [shape = 'u32[]', space=smem, size = 0x4, offset = 0x4, fixed_abs, tag = 'smem constant byte address 0x4 - core index']
  #allocation1 [shape = 'u32[72,128]{1,0:T(1,128)}', space=vmem, size = 0x9000, scoped, tag = 'internal scratch']
  %s0 = inlined_call_operand.hbm [shape: f32[8,128], index: 0, kind: input, shape index: {}]
  %s1 = inlined_call_operand.vmem [shape: bf16[272,128], index: 1, kind: input, shape index: {}]
  %s2 = inlined_call_operand.vmem [shape: f32[128,8], index: 2, kind: input, shape index: {}]
  %s3 = inlined_call_operand.hbm [shape: f32[16,128], index: 3, kind: output, shape index: {}]
  %s4 = sld [smem:[#allocation0]]
  $region26: #{tpu_custom_call.1} parent=0
    _
  %s6 = ssub.s32 1, %s4
  %s7 = scalar_select 0, %s6, %s4
  $region1: #{tpu_custom_call.1} parent=0
    #allocation2 [shape = 'u8[4096]{0}', space=vmem, size = 0x1000, scoped, tag = 'input window, operand 0, single buffered']
    #allocation3 [shape = 's32[1]{0}', space=sflag, size = 0x4, scoped, tag = 'scoped memory for tpu_custom_call.1']
    #allocation4 [shape = 's32[1]{0}', space=sflag, size = 0x4, scoped, tag = 'scoped memory for tpu_custom_call.1']
    #allocation5 [shape = 'u8[8192]{0}', space=vmem, size = 0x2000, scoped, tag = 'output window, operand 0, single buffered']
    %8 = vsyncpa [#allocation3], 0
    %9 = vsyncpa [#allocation4], 0
    // Predicated region
    $region2: #{tpu_custom_call.1} parent=1 // pred_check
      _
    $region3: #{tpu_custom_call.1} parent=1 // pred_check_branch
      %11 = sbr.rel (0) target = $region5
    $region4: #{tpu_custom_call.1} parent=1 // pred_region
      %13 = vsyncadd [#allocation3], 0
      %s15 = sshll.u32 %s0, 4
      %s16 = int_to_ptr.hbm [resolvable:$true] %s15
      %s17 = sshll.u32 [#allocation2], 4
      %s18 = int_to_ptr.vmem [resolvable:$true] %s17
      %20 = dma.hbm_to_vmem [thread:$0]  %s16, 128, %s18, [#allocation3]
    $region5: #{tpu_custom_call.1} parent=1 // pred_fallthru
      _
    // Predicated region
    $region6: #{tpu_custom_call.1} parent=1 // pred_check
      _
    $region7: #{tpu_custom_call.1} parent=1 // pred_check_branch
      %22 = sbr.rel (0) target = $region9
    $region8: #{tpu_custom_call.1} parent=1 // pred_region
      _
    $region9: #{tpu_custom_call.1} parent=1 // pred_fallthru
      _
    // Predicated region
    $region10: #{tpu_custom_call.1} parent=1 // pred_check
      _
    $region11: #{tpu_custom_call.1} parent=1 // pred_check_branch
      %24 = sbr.rel (0) target = $region13
    $region12: #{tpu_custom_call.1} parent=1 // pred_region
      _
    $region13: #{tpu_custom_call.1} parent=1 // pred_fallthru
      _
    // Predicated region
    $region14: #{tpu_custom_call.1} parent=1 // pred_check
      _
    $region15: #{tpu_custom_call.1} parent=1 // pred_check_branch
      %26 = sbr.rel (0) target = $region17
    $region16: #{tpu_custom_call.1} parent=1 // pred_region
      %28 = dma.done [#allocation3], 128
    $region17: #{tpu_custom_call.1} parent=1 // pred_fallthru
      _
    %v29 = vld [vmem:[#allocation2] sm:$0xff]
    %v30 = vpack.c.bf16 0.0, %v29
    %v31 = vpack.c.bf16 0.0, 0.0
    %v32 = vld [vmem:[%s1] sm:$0xf]
    %v33 = vld [vmem:[%s1 + $0x4] sm:$0xf]
    %v34 = vld [vmem:[%s1 + $0x8] sm:$0xf]
    %v35 = vld [vmem:[%s1 + $0xc] sm:$0xf]
    %v36 = vld [vmem:[%s1 + $0x10] sm:$0xf]
    %v37 = vld [vmem:[%s1 + $0x14] sm:$0xf]
    %v38 = vld [vmem:[%s1 + $0x18] sm:$0xf]
    %v39 = vld [vmem:[%s1 + $0x1c] sm:$0xf]
    %v40 = vld [vmem:[%s1 + $0x20] sm:$0xf]
    %v41 = vld [vmem:[%s1 + $0x24] sm:$0xf]
    %v42 = vld [vmem:[%s1 + $0x28] sm:$0xf]
    %v43 = vld [vmem:[%s1 + $0x2c] sm:$0xf]
    %v44 = vld [vmem:[%s1 + $0x30] sm:$0xf]
    %v45 = vld [vmem:[%s1 + $0x34] sm:$0xf]
    %v46 = vld [vmem:[%s1 + $0x38] sm:$0xf]
    %v47 = vld [vmem:[%s1 + $0x3c] sm:$0xf]
    %v48 = vld [vmem:[%s1 + $0x40] sm:$0xf]
    %v49 = vld [vmem:[%s1 + $0x44] sm:$0xf]
    %v50 = vld [vmem:[%s1 + $0x48] sm:$0xf]
    %v51 = vld [vmem:[%s1 + $0x4c] sm:$0xf]
    %v52 = vld [vmem:[%s1 + $0x50] sm:$0xf]
    %v53 = vld [vmem:[%s1 + $0x54] sm:$0xf]
    %v54 = vld [vmem:[%s1 + $0x58] sm:$0xf]
    %v55 = vld [vmem:[%s1 + $0x5c] sm:$0xf]
    %v56 = vld [vmem:[%s1 + $0x60] sm:$0xf]
    %v57 = vld [vmem:[%s1 + $0x64] sm:$0xf]
    %v58 = vld [vmem:[%s1 + $0x68] sm:$0xf]
    %v59 = vld [vmem:[%s1 + $0x6c] sm:$0xf]
    %v60 = vld [vmem:[%s1 + $0x70] sm:$0xf]
    %v61 = vld [vmem:[%s1 + $0x74] sm:$0xf]
    %v62 = vld [vmem:[%s1 + $0x78] sm:$0xf]
    %v63 = vld [vmem:[%s1 + $0x7c] sm:$0xf]
    %v64 = vld [vmem:[%s1 + $0x80] sm:$0xf]
    %v65 = vld [vmem:[%s1 + $0x84] sm:$0xf]
    %v66 = vld [vmem:[%s2] sm:$0xff]
    %v67 = vld [vmem:[%s2 + $0x8] sm:$0xff]
    %v68 = vld [vmem:[%s2 + $0x10] sm:$0xff]
    %v69 = vld [vmem:[%s2 + $0x18] sm:$0xff]
    %v70 = vld [vmem:[%s2 + $0x20] sm:$0xff]
    %v71 = vld [vmem:[%s2 + $0x28] sm:$0xff]
    %v72 = vld [vmem:[%s2 + $0x30] sm:$0xff]
    %v73 = vld [vmem:[%s2 + $0x38] sm:$0xff]
    %v74 = vld [vmem:[%s2 + $0x40] sm:$0xff]
    %v75 = vld [vmem:[%s2 + $0x48] sm:$0xff]
    %v76 = vld [vmem:[%s2 + $0x50] sm:$0xff]
    %v77 = vld [vmem:[%s2 + $0x58] sm:$0xff]
    %v78 = vld [vmem:[%s2 + $0x60] sm:$0xff]
    %v79 = vld [vmem:[%s2 + $0x68] sm:$0xff]
    %v80 = vld [vmem:[%s2 + $0x70] sm:$0xff]
    %v81 = vld [vmem:[%s2 + $0x78] sm:$0xff]
    %83 = vset.pattern.permute.xlu0 0
    %84 = vperm.xlu0 %83, %v66
    %v85 = vpop.permute.xlu0 %84
    %88 = vset.pattern.permute.xlu0 0
    %89 = vperm.xlu0 %88, %v67
    %v90 = vpop.permute.xlu0 %89
    %93 = vset.pattern.permute.xlu0 0
    %94 = vperm.xlu0 %93, %v68
    %v95 = vpop.permute.xlu0 %94
    %98 = vset.pattern.permute.xlu0 0
    %99 = vperm.xlu0 %98, %v69
    %v100 = vpop.permute.xlu0 %99
    %103 = vset.pattern.permute.xlu0 0
    %104 = vperm.xlu0 %103, %v70
    %v105 = vpop.permute.xlu0 %104
    %108 = vset.pattern.permute.xlu0 0
    %109 = vperm.xlu0 %108, %v71
    %v110 = vpop.permute.xlu0 %109
    %113 = vset.pattern.permute.xlu0 0
    %114 = vperm.xlu0 %113, %v72
    %v115 = vpop.permute.xlu0 %114
    %118 = vset.pattern.permute.xlu0 0
    %119 = vperm.xlu0 %118, %v73
    %v120 = vpop.permute.xlu0 %119
    %123 = vset.pattern.permute.xlu0 0
    %124 = vperm.xlu0 %123, %v74
    %v125 = vpop.permute.xlu0 %124
    %128 = vset.pattern.permute.xlu0 0
    %129 = vperm.xlu0 %128, %v75
    %v130 = vpop.permute.xlu0 %129
    %133 = vset.pattern.permute.xlu0 0
    %134 = vperm.xlu0 %133, %v76
    %v135 = vpop.permute.xlu0 %134
    %138 = vset.pattern.permute.xlu0 0
    %139 = vperm.xlu0 %138, %v77
    %v140 = vpop.permute.xlu0 %139
    %143 = vset.pattern.permute.xlu0 0
    %144 = vperm.xlu0 %143, %v78
    %v145 = vpop.permute.xlu0 %144
    %148 = vset.pattern.permute.xlu0 0
    %149 = vperm.xlu0 %148, %v79
    %v150 = vpop.permute.xlu0 %149
    %153 = vset.pattern.permute.xlu0 0
    %154 = vperm.xlu0 %153, %v80
    %v155 = vpop.permute.xlu0 %154
    %158 = vset.pattern.permute.xlu0 0
    %159 = vperm.xlu0 %158, %v81
    %v160 = vpop.permute.xlu0 %159
    %v178 = vunpack.c.l.b16 %v32
    %v179 = vunpack.c.l.b16 %v33
    %v180 = vunpack.c.l.b16 %v34
    %v181 = vunpack.c.l.b16 %v35
    %v182 = vunpack.c.l.b16 %v36
    %v183 = vunpack.c.l.b16 %v37
    %v184 = vunpack.c.l.b16 %v38
    %v185 = vunpack.c.l.b16 %v39
    %v186 = vunpack.c.l.b16 %v40
    %v187 = vunpack.c.l.b16 %v41
    %v188 = vunpack.c.l.b16 %v42
    %v189 = vunpack.c.l.b16 %v43
    %v190 = vunpack.c.l.b16 %v44
    %v191 = vunpack.c.l.b16 %v45
    %v192 = vunpack.c.l.b16 %v46
    %v193 = vunpack.c.l.b16 %v47
    %v194 = vpack.c.b16 %v179, %v178
    %v195 = vpack.c.b16 %v181, %v180
    %v196 = vpack.c.b16 %v183, %v182
    %v197 = vpack.c.b16 %v185, %v184
    %v198 = vpack.c.b16 %v187, %v186
    %v199 = vpack.c.b16 %v189, %v188
    %v200 = vpack.c.b16 %v191, %v190
    %v201 = vpack.c.b16 %v193, %v192
    %210 = vmatpush.bf16.msra.mxu0 %v31
    %211 = vmatpush.bf16.msra.mxu0 %v31
    %212 = vmatpush.bf16.msra.mxu0 %v31
    %213 = vmatpush.bf16.msra.mxu0 %v31
    %214 = vmatpush.bf16.msra.mxu0 %v31
    %215 = vmatpush.bf16.msra.mxu0 %v31
    %216 = vmatpush.bf16.msra.mxu0 %v31
    %217 = vmatpush.bf16.msra.mxu0 %v30
    %218 = vmatmul.bf16.gmra.mxu0 %v194
    %v219 = vpop.f32.mrf.mxu0
    %v220 = vadd.f32 %v85, %v219
    %v221 = vpop.f32.mrf.mxu0
    %v222 = vadd.f32 %v90, %v221
    %223 = vmatmul.bf16.gmra.mxu0 %v195
    %v224 = vpop.f32.mrf.mxu0
    %v225 = vadd.f32 %v95, %v224
    %v226 = vpop.f32.mrf.mxu0
    %v227 = vadd.f32 %v100, %v226
    %228 = vmatmul.bf16.gmra.mxu0 %v196
    %v229 = vpop.f32.mrf.mxu0
    %v230 = vadd.f32 %v105, %v229
    %v231 = vpop.f32.mrf.mxu0
    %v232 = vadd.f32 %v110, %v231
    %233 = vmatmul.bf16.gmra.mxu0 %v197
    %v234 = vpop.f32.mrf.mxu0
    %v235 = vadd.f32 %v115, %v234
    %v236 = vpop.f32.mrf.mxu0
    %v237 = vadd.f32 %v120, %v236
    %238 = vmatmul.bf16.gmra.mxu0 %v198
    %v239 = vpop.f32.mrf.mxu0
    %v240 = vadd.f32 %v125, %v239
    %v241 = vpop.f32.mrf.mxu0
    %v242 = vadd.f32 %v130, %v241
    %243 = vmatmul.bf16.gmra.mxu0 %v199
    %v244 = vpop.f32.mrf.mxu0
    %v245 = vadd.f32 %v135, %v244
    %v246 = vpop.f32.mrf.mxu0
    %v247 = vadd.f32 %v140, %v246
    %248 = vmatmul.bf16.gmra.mxu0 %v200
    %v249 = vpop.f32.mrf.mxu0
    %v250 = vadd.f32 %v145, %v249
    %v251 = vpop.f32.mrf.mxu0
    %v252 = vadd.f32 %v150, %v251
    %253 = vmatmul.bf16.gmra.mxu0 %v201
    %v254 = vpop.f32.mrf.mxu0
    %v255 = vadd.f32 %v155, %v254
    %v256 = vpop.f32.mrf.mxu0
    %v257 = vadd.f32 %v160, %v256
    %258 = vdwg.mxu0
    %v259 = vtanh.pop %v220
    %v260 = vtanh.pop %v222
    %v261 = vtanh.pop %v225
    %v262 = vtanh.pop %v227
    %v263 = vtanh.pop %v230
    %v264 = vtanh.pop %v232
    %v265 = vtanh.pop %v235
    %v266 = vtanh.pop %v237
    %v267 = vtanh.pop %v240
    %v268 = vtanh.pop %v242
    %v269 = vtanh.pop %v245
    %v270 = vtanh.pop %v247
    %v271 = vtanh.pop %v250
    %v272 = vtanh.pop %v252
    %v273 = vtanh.pop %v255
    %v274 = vtanh.pop %v257
    %v275 = vpack.c.bf16 %v260, %v259
    %v276 = vpack.c.bf16 %v262, %v261
    %v277 = vpack.c.bf16 %v264, %v263
    %v278 = vpack.c.bf16 %v266, %v265
    %v279 = vpack.c.bf16 %v268, %v267
    %v280 = vpack.c.bf16 %v270, %v269
    %v281 = vpack.c.bf16 %v272, %v271
    %v282 = vpack.c.bf16 %v274, %v273
    %283 = vset.pattern.permute.xlu0 1
    %284 = vperm.xlu0 %283, %v66
    %v285 = vpop.permute.xlu0 %284
    %287 = vset.pattern.permute.xlu0 1
    %288 = vperm.xlu0 %287, %v67
    %v289 = vpop.permute.xlu0 %288
    %291 = vset.pattern.permute.xlu0 1
    %292 = vperm.xlu0 %291, %v68
    %v293 = vpop.permute.xlu0 %292
    %295 = vset.pattern.permute.xlu0 1
    %296 = vperm.xlu0 %295, %v69
    %v297 = vpop.permute.xlu0 %296
    %299 = vset.pattern.permute.xlu0 1
    %300 = vperm.xlu0 %299, %v70
    %v301 = vpop.permute.xlu0 %300
    %303 = vset.pattern.permute.xlu0 1
    %304 = vperm.xlu0 %303, %v71
    %v305 = vpop.permute.xlu0 %304
    %307 = vset.pattern.permute.xlu0 1
    %308 = vperm.xlu0 %307, %v72
    %v309 = vpop.permute.xlu0 %308
    %311 = vset.pattern.permute.xlu0 1
    %312 = vperm.xlu0 %311, %v73
    %v313 = vpop.permute.xlu0 %312
    %315 = vset.pattern.permute.xlu0 1
    %316 = vperm.xlu0 %315, %v74
    %v317 = vpop.permute.xlu0 %316
    %319 = vset.pattern.permute.xlu0 1
    %320 = vperm.xlu0 %319, %v75
    %v321 = vpop.permute.xlu0 %320
    %323 = vset.pattern.permute.xlu0 1
    %324 = vperm.xlu0 %323, %v76
    %v325 = vpop.permute.xlu0 %324
    %327 = vset.pattern.permute.xlu0 1
    %328 = vperm.xlu0 %327, %v77
    %v329 = vpop.permute.xlu0 %328
    %331 = vset.pattern.permute.xlu0 1
    %332 = vperm.xlu0 %331, %v78
    %v333 = vpop.permute.xlu0 %332
    %335 = vset.pattern.permute.xlu0 1
    %336 = vperm.xlu0 %335, %v79
    %v337 = vpop.permute.xlu0 %336
    %339 = vset.pattern.permute.xlu0 1
    %340 = vperm.xlu0 %339, %v80
    %v341 = vpop.permute.xlu0 %340
    %343 = vset.pattern.permute.xlu0 1
    %344 = vperm.xlu0 %343, %v81
    %v345 = vpop.permute.xlu0 %344
    %v363 = vunpack.c.l.b16 %v48
    %v364 = vunpack.c.l.b16 %v49
    %v365 = vunpack.c.l.b16 %v50
    %v366 = vunpack.c.l.b16 %v51
    %v367 = vunpack.c.l.b16 %v52
    %v368 = vunpack.c.l.b16 %v53
    %v369 = vunpack.c.l.b16 %v54
    %v370 = vunpack.c.l.b16 %v55
    %v371 = vunpack.c.l.b16 %v56
    %v372 = vunpack.c.l.b16 %v57
    %v373 = vunpack.c.l.b16 %v58
    %v374 = vunpack.c.l.b16 %v59
    %v375 = vunpack.c.l.b16 %v60
    %v376 = vunpack.c.l.b16 %v61
    %v377 = vunpack.c.l.b16 %v62
    %v378 = vunpack.c.l.b16 %v63
    %v379 = vpack.c.b16 %v364, %v363
    %v380 = vpack.c.b16 %v366, %v365
    %v381 = vpack.c.b16 %v368, %v367
    %v382 = vpack.c.b16 %v370, %v369
    %v383 = vpack.c.b16 %v372, %v371
    %v384 = vpack.c.b16 %v374, %v373
    %v385 = vpack.c.b16 %v376, %v375
    %v386 = vpack.c.b16 %v378, %v377
    %395 = vmatpush.bf16.msra.mxu0 %v282
    %396 = vmatpush.bf16.msra.mxu0 %v281
    %397 = vmatpush.bf16.msra.mxu0 %v280
    %398 = vmatpush.bf16.msra.mxu0 %v279
    %399 = vmatpush.bf16.msra.mxu0 %v278
    %400 = vmatpush.bf16.msra.mxu0 %v277
    %401 = vmatpush.bf16.msra.mxu0 %v276
    %402 = vmatpush.bf16.msra.mxu0 %v275
    %403 = vmatmul.bf16.gmra.mxu0 %v379
    %v404 = vpop.f32.mrf.mxu0
    %v405 = vadd.f32 %v285, %v404
    %v406 = vpop.f32.mrf.mxu0
    %v407 = vadd.f32 %v289, %v406
    %408 = vmatmul.bf16.gmra.mxu0 %v380
    %v409 = vpop.f32.mrf.mxu0
    %v410 = vadd.f32 %v293, %v409
    %v411 = vpop.f32.mrf.mxu0
    %v412 = vadd.f32 %v297, %v411
    %413 = vmatmul.bf16.gmra.mxu0 %v381
    %v414 = vpop.f32.mrf.mxu0
    %v415 = vadd.f32 %v301, %v414
    %v416 = vpop.f32.mrf.mxu0
    %v417 = vadd.f32 %v305, %v416
    %418 = vmatmul.bf16.gmra.mxu0 %v382
    %v419 = vpop.f32.mrf.mxu0
    %v420 = vadd.f32 %v309, %v419
    %v421 = vpop.f32.mrf.mxu0
    %v422 = vadd.f32 %v313, %v421
    %423 = vmatmul.bf16.gmra.mxu0 %v383
    %v424 = vpop.f32.mrf.mxu0
    %v425 = vadd.f32 %v317, %v424
    %v426 = vpop.f32.mrf.mxu0
    %v427 = vadd.f32 %v321, %v426
    %428 = vmatmul.bf16.gmra.mxu0 %v384
    %v429 = vpop.f32.mrf.mxu0
    %v430 = vadd.f32 %v325, %v429
    %v431 = vpop.f32.mrf.mxu0
    %v432 = vadd.f32 %v329, %v431
    %433 = vmatmul.bf16.gmra.mxu0 %v385
    %v434 = vpop.f32.mrf.mxu0
    %v435 = vadd.f32 %v333, %v434
    %v436 = vpop.f32.mrf.mxu0
    %v437 = vadd.f32 %v337, %v436
    %438 = vmatmul.bf16.gmra.mxu0 %v386
    %v439 = vpop.f32.mrf.mxu0
    %v440 = vadd.f32 %v341, %v439
    %v441 = vpop.f32.mrf.mxu0
    %v442 = vadd.f32 %v345, %v441
    %443 = vdwg.mxu0
    %v444 = vtanh.pop %v405
    %v445 = vtanh.pop %v407
    %v446 = vtanh.pop %v410
    %v447 = vtanh.pop %v412
    %v448 = vtanh.pop %v415
    %v449 = vtanh.pop %v417
    %v450 = vtanh.pop %v420
    %v451 = vtanh.pop %v422
    %v452 = vtanh.pop %v425
    %v453 = vtanh.pop %v427
    %v454 = vtanh.pop %v430
    %v455 = vtanh.pop %v432
    %v456 = vtanh.pop %v435
    %v457 = vtanh.pop %v437
    %v458 = vtanh.pop %v440
    %v459 = vtanh.pop %v442
    %v460 = vpack.c.bf16 %v445, %v444
    %v461 = vpack.c.bf16 %v447, %v446
    %v462 = vpack.c.bf16 %v449, %v448
    %v463 = vpack.c.bf16 %v451, %v450
    %v464 = vpack.c.bf16 %v453, %v452
    %v465 = vpack.c.bf16 %v455, %v454
    %v466 = vpack.c.bf16 %v457, %v456
    %v467 = vpack.c.bf16 %v459, %v458
    %468 = vset.pattern.permute.xlu0 2
    %469 = vperm.xlu0 %468, %v66
    %v470 = vpop.permute.xlu0 %469
    %472 = vset.pattern.permute.xlu0 2
    %473 = vperm.xlu0 %472, %v67
    %v474 = vpop.permute.xlu0 %473
    %v478 = vunpack.c.l.b16 %v64
    %v479 = vunpack.c.l.b16 %v65
    %v480 = vpack.c.b16 %v479, %v478
    %482 = vmatpush.bf16.msra.mxu0 %v467
    %483 = vmatpush.bf16.msra.mxu0 %v466
    %484 = vmatpush.bf16.msra.mxu0 %v465
    %485 = vmatpush.bf16.msra.mxu0 %v464
    %486 = vmatpush.bf16.msra.mxu0 %v463
    %487 = vmatpush.bf16.msra.mxu0 %v462
    %488 = vmatpush.bf16.msra.mxu0 %v461
    %489 = vmatpush.bf16.msra.mxu0 %v460
    %490 = vmatmul.bf16.gmra.mxu0 %v480
    %v491 = vpop.f32.mrf.mxu0
    %v492 = vadd.f32 %v470, %v491
    %v493 = vpop.f32.mrf.mxu0
    %v494 = vadd.f32 %v474, %v493
    %495 = vdwg.mxu0
    %496 = vst [vmem:[#allocation5] sm:$0xff] %v492
    %497 = vst [vmem:[#allocation5 + $0x8] sm:$0xff] %v494
    // Predicated region
    $region18: #{tpu_custom_call.1} parent=1 // pred_check
      _
    $region19: #{tpu_custom_call.1} parent=1 // pred_check_branch
      %499 = sbr.rel (0) target = $region21
    $region20: #{tpu_custom_call.1} parent=1 // pred_region
      %501 = vsyncadd [#allocation4], 0
      %s502 = sshll.u32 [#allocation5], 4
      %s503 = int_to_ptr.vmem [resolvable:$true] %s502
      %s504 = sshll.u32 %s3, 4
      %s505 = int_to_ptr.hbm [resolvable:$true] %s504
      %510 = dma.vmem_to_hbm [thread:$0]  %s503, 256, %s505, [#allocation4], 128, 128, 8
    $region21: #{tpu_custom_call.1} parent=1 // pred_fallthru
      _
    // Predicated region
    $region22: #{tpu_custom_call.1} parent=1 // pred_check
      _
    $region23: #{tpu_custom_call.1} parent=1 // pred_check_branch
      %512 = sbr.rel (0) target = $region25
    $region24: #{tpu_custom_call.1} parent=1 // pred_region
      %514 = dma.done [#allocation4], 256
    $region25: #{tpu_custom_call.1} parent=1 // pred_fallthru
      _
    %515 = vsyncpa [#allocation3], 1
    %516 = vsyncpa [#allocation4], 1

</llo_original>
